<compile_context>
chip_gen: v7x
topology: tpu7x:2x2x1
jax: 0.10.0
libtpu: 0.0.40
codegen_flags: <defaults>
</compile_context>

<pallas_src>
from functools import partial, reduce

import numpy as np
import jax
import jax.numpy as jnp
from jax.experimental import pallas as pl
from jax.experimental.pallas import tpu as pltpu


# ----------------------------- Pallas kernel ------------------------------- #

def _packed_matmul_kernel(x_ref, w_ref, y_ref, acc_ref):
    """Accumulate one (B, tk) x (tk, tn) partial product into (B, tn)."""
    k = pl.program_id(1)

    @pl.when(k == 0)
    def _():
        acc_ref[...] = jnp.zeros_like(acc_ref)

    acc_ref[...] += jnp.dot(
        x_ref[...], w_ref[...], preferred_element_type=jnp.float32
    )

    @pl.when(k == pl.num_programs(1) - 1)
    def _():
        y_ref[...] = acc_ref[...].astype(y_ref.dtype)


def packed_matmul_pallas(x, w, *, max_tile=512):
    """y = x @ w with x:(B, K), w:(K, N), tiled over (N-tiles, K-tiles)."""
    B, K = x.shape
    K2, N = w.shape
    assert K == K2, (K, K2)

    # Tile sizes: full extent for small problems, else lane-aligned tiles.
    if K <= max_tile:
        tk = K
    else:
        assert K % 128 == 0
        tk = max_tile if K % max_tile == 0 else 128
    if N <= max_tile:
        tn = N
    else:
        assert N % 128 == 0
        tn = max_tile if N % max_tile == 0 else 128

    grid = (N // tn, K // tk)

    itemsize = jnp.dtype(x.dtype).itemsize
    flops = 2 * B * K * N
    bytes_accessed = (B * K + K * N + B * N) * itemsize

    return pl.pallas_call(
        _packed_matmul_kernel,
        out_shape=jax.ShapeDtypeStruct((B, N), x.dtype),
        grid_spec=pltpu.PrefetchScalarGridSpec(
            num_scalar_prefetch=0,
            grid=grid,
            in_specs=[
                pl.BlockSpec((B, tk), lambda j, k: (0, k)),
                pl.BlockSpec((tk, tn), lambda j, k: (k, j)),
            ],
            out_specs=pl.BlockSpec((B, tn), lambda j, k: (0, j)),
            scratch_shapes=[pltpu.VMEM((B, tn), jnp.float32)],
        ),
        compiler_params=pltpu.CompilerParams(
            dimension_semantics=("parallel", "arbitrary"),
        ),
        cost_estimate=pl.CostEstimate(
            flops=flops, transcendentals=0, bytes_accessed=bytes_accessed
        ),
    )(x, w)


# ------------------------- parameter / gate setup --------------------------- #

def kronecker(A, B):
    return jnp.einsum("ab,cd->acbd", A, B).reshape(
        A.shape[0] * B.shape[0], A.shape[1] * B.shape[1]
    )


def kronecker_complex(A, B):
    A_r, A_i = A
    B_r, B_i = B
    return (
        kronecker(A_r, B_r) - kronecker(A_i, B_i),
        kronecker(A_i, B_r) + kronecker(A_r, B_i),
    )


def build_op(params):
    """Dense (D, D) complex operator from per-qubit RX gates."""
    n_qubit = params.shape[0]
    cos = jnp.cos(params / 2.0).reshape(n_qubit, 1)
    sin = jnp.sin(params / 2.0).reshape(n_qubit, 1)
    zero = jnp.zeros_like(cos)
    real_gate = jnp.concatenate([cos, zero, zero, cos], axis=-1).reshape(n_qubit, 2, 2)
    imag_gate = jnp.concatenate([zero, -sin, -sin, zero], axis=-1).reshape(n_qubit, 2, 2)
    gates = [(real_gate[q], imag_gate[q]) for q in range(n_qubit)]
    op_r, op_i = reduce(kronecker_complex, gates)
    return op_r, op_i


@partial(jax.jit, static_argnames=("compute_dtype",))
def parallel_rx_complex_forward(x, params, *, compute_dtype=None):
    """x = (x_real, x_imag), each (B, 2**n_qubit)."""
    op_r, op_i = build_op(params)
    xr, xi = x
    B, D = xr.shape

    # Pack complex product into one lane-dense real matmul.
    X = jnp.concatenate([xr, xi], axis=-1)                       # (B, 2D)
    W = jnp.concatenate(
        [
            jnp.concatenate([op_r, op_i], axis=-1),              # [ op_r  op_i]
            jnp.concatenate([-op_i, op_r], axis=-1),             # [-op_i  op_r]
        ],
        axis=0,
    )                                                            # (2D, 2D)

    if compute_dtype is not None:
        X = X.astype(compute_dtype)
        W = W.astype(compute_dtype)

    Y = packed_matmul_pallas(X, W)                               # (B, 2D)
    Y = Y.astype(xr.dtype)
    return Y[:, :D], Y[:, D:]


# --------------------------------- main ------------------------------------ #

if __name__ == "__main__":
    n_qubit = 6                  # D = 2**6 = 64  ->  packed lane width 2D = 128
    D = 2 ** n_qubit
    B = 8                        # batch of complex state vectors

    key = jax.random.PRNGKey(0)
    k_params, k_xr, k_xi = jax.random.split(key, 3)

    # deterministic parameter init matching torch: (rand*2 - 1) * pi
    params = (jax.random.uniform(k_params, (n_qubit,), dtype=jnp.float32) * 2.0 - 1.0) * np.pi

    xr = jax.random.normal(k_xr, (B, D), dtype=jnp.float32)
    xi = jax.random.normal(k_xi, (B, D), dtype=jnp.float32)

    yr, yi = parallel_rx_complex_forward((xr, xi), params)
    yr = jax.block_until_ready(yr)
    yi = jax.block_until_ready(yi)

    # reference (pure JAX) check of the forward semantics
    op_r, op_i = build_op(params)
    yr_ref = xr @ op_r - xi @ op_i
    yi_ref = xr @ op_i + xi @ op_r
    assert np.allclose(np.asarray(yr), np.asarray(yr_ref), atol=1e-5, rtol=1e-5)
    assert np.allclose(np.asarray(yi), np.asarray(yi_ref), atol=1e-5, rtol=1e-5)

    print("KERNEL_OK")
</pallas_src>

<mosaic_0001>
module attributes {stable_mosaic.version = 11 : i64} {
  func.func @_packed_matmul_kernel(%arg0: i32, %arg1: i32, %arg2: memref<8x128xf32, #tpu.memory_space<vmem>>, %arg3: memref<128x128xf32, #tpu.memory_space<vmem>>, %arg4: memref<8x128xf32, #tpu.memory_space<vmem>>, %arg5: memref<8x128xf32, #tpu.memory_space<vmem>>) attributes {dimension_semantics = [#tpu.dimension_semantics<parallel>, #tpu.dimension_semantics<arbitrary>], iteration_bounds = array<i64: 1, 1>, scalar_prefetch = 0 : i64, scratch_operands = 1 : i64, tpu.core_type = #tpu.core_type<tc>, window_params = [{transform_indices = @transform_0, window_bounds = array<i64: 8, 128>}, {transform_indices = @transform_1, window_bounds = array<i64: 128, 128>}, {transform_indices = @transform_2, window_bounds = array<i64: 8, 128>}]} {
    %c0_i32 = arith.constant 0 : i32
    %0 = arith.cmpi eq, %arg1, %c0_i32 : i32
    %1 = arith.extui %0 : i1 to i32
    %c0_i32_0 = arith.constant 0 : i32
    %2 = arith.cmpi ne, %1, %c0_i32_0 : i32
    scf.if %2 {
      %cst_10 = arith.constant 0.000000e+00 : f32
      %12 = vector.broadcast %cst_10 : f32 to vector<8x128xf32>
      %c0_11 = arith.constant 0 : index
      %c0_12 = arith.constant 0 : index
      %13 = vector.load %arg5[%c0_11, %c0_12] : memref<8x128xf32, #tpu.memory_space<vmem>>, vector<8x128xf32>
      tpu.vector_store %arg5[%c0_11, %c0_12], %12 {strides = array<i32>} : memref<8x128xf32, #tpu.memory_space<vmem>>, vector<8x128xf32>,
    } else {
    }
    %c0 = arith.constant 0 : index
    %c0_1 = arith.constant 0 : index
    %3 = vector.load %arg5[%c0, %c0_1] : memref<8x128xf32, #tpu.memory_space<vmem>>, vector<8x128xf32>
    %c0_2 = arith.constant 0 : index
    %c0_3 = arith.constant 0 : index
    %4 = vector.load %arg2[%c0_2, %c0_3] : memref<8x128xf32, #tpu.memory_space<vmem>>, vector<8x128xf32>
    %c0_4 = arith.constant 0 : index
    %c0_5 = arith.constant 0 : index
    %5 = vector.load %arg3[%c0_4, %c0_5] : memref<128x128xf32, #tpu.memory_space<vmem>>, vector<128x128xf32>
    %cst = arith.constant dense<0.000000e+00> : vector<8x128xf32>
    %6 = tpu.matmul %4, %5, %cst {dimension_numbers = #tpu.dot_dimension_numbers<[1], [0], [0], [1], [0, 0, 1, 1], [], []>} : vector<8x128xf32>, vector<128x128xf32>, vector<8x128xf32> -> vector<8x128xf32>
    %7 = arith.addf %3, %6 : vector<8x128xf32>
    %c0_6 = arith.constant 0 : index
    %c0_7 = arith.constant 0 : index
    %8 = vector.load %arg5[%c0_6, %c0_7] : memref<8x128xf32, #tpu.memory_space<vmem>>, vector<8x128xf32>
    tpu.vector_store %arg5[%c0_6, %c0_7], %7 {strides = array<i32>} : memref<8x128xf32, #tpu.memory_space<vmem>>, vector<8x128xf32>,
    %c0_i32_8 = arith.constant 0 : i32
    %9 = arith.cmpi eq, %arg1, %c0_i32_8 : i32
    %10 = arith.extui %9 : i1 to i32
    %c0_i32_9 = arith.constant 0 : i32
    %11 = arith.cmpi ne, %10, %c0_i32_9 : i32
    scf.if %11 {
      %c0_10 = arith.constant 0 : index
      %c0_11 = arith.constant 0 : index
      %12 = vector.load %arg5[%c0_10, %c0_11] : memref<8x128xf32, #tpu.memory_space<vmem>>, vector<8x128xf32>
      %c0_12 = arith.constant 0 : index
      %c0_13 = arith.constant 0 : index
      %13 = vector.load %arg4[%c0_12, %c0_13] : memref<8x128xf32, #tpu.memory_space<vmem>>, vector<8x128xf32>
      tpu.vector_store %arg4[%c0_12, %c0_13], %12 {strides = array<i32>} : memref<8x128xf32, #tpu.memory_space<vmem>>, vector<8x128xf32>,
    } else {
    }
    return
  }
  func.func @transform_0(%arg0: i32, %arg1: i32) -> (i32, i32) {
    %c0_i32 = arith.constant 0 : i32
    %c0_i32_0 = arith.constant 0 : i32
    return %c0_i32, %arg1 : i32, i32
  }
  func.func @transform_1(%arg0: i32, %arg1: i32) -> (i32, i32) {
    %c0_i32 = arith.constant 0 : i32
    return %arg1, %arg0 : i32, i32
  }
  func.func @transform_2(%arg0: i32, %arg1: i32) -> (i32, i32) {
    %c0_i32 = arith.constant 0 : i32
    %c0_i32_0 = arith.constant 0 : i32
    return %c0_i32, %arg0 : i32, i32
  }
}

</mosaic_0001>

<llo_original>
// kernel: squeeze.12
$region0: #{squeeze.12}
  %s0 = inlined_call_operand.vmem [shape: f32[4], index: 0, kind: input, shape index: {}]
  %s1 = inlined_call_operand.vmem [shape: f32[2,2], index: 1, kind: output, shape index: {}]
  $region1: #{squeeze.12} parent=0
    #allocation0 [shape = 'u8[4096]{0}', space=vmem, size = 0x1000, scoped, tag = 'scoped mem for output reshape']
    #allocation1 [shape = 'u8[4096]{0}', space=vmem, size = 0x1000, scoped, tag = 'scoped mem for input reshape']
    %s3 = sshllo.u32 0, 1
    %v4 = vld [vmem:[%s0] sm:%s3]
    %5 = vst [vmem:[#allocation1] sm:%s3] %v4
    %v6 = vld [vmem:[#allocation1] sm:$0x1]
    %vm7 = vcmask 15360
    %8 = vst.msk [vmem:[#allocation0] sm:$0x1] %vm7, %v6
    %v9 = vld [vmem:[#allocation1] sm:$0x1]
    %10 = vrot.lane.b32.xlu0 %v9, 126
    %v11 = vpop.permute.xlu0 %10
    %vm12 = vcmask 15360
    %s13 = scalar_lea.vmem [#allocation0], 1
    %14 = vst.msk [vmem:[%s13] sm:$0x1] %vm12, %v11
    %s16 = sshllo.u32 0, 2
    %v18 = vld [vmem:[#allocation0] sm:%s16]
    %s19 = sshllo.u32 0, 2
    %20 = vst [vmem:[%s1] sm:%s19] %v18

// kernel: neg.5
$region0: #{neg.5}
  #allocation0 [shape = 's32[1]{0}', space=sflag, size = 0x4, scoped, tag = 'scoped memory for neg.5']
  %s0 = inlined_call_operand.vmem [shape: f32[64,64], index: 0, kind: input, shape index: {}]
  %s1 = inlined_call_operand.vmem [shape: f32[64,64], index: 1, kind: output, shape index: {}]
  %v2 = vld [vmem:[%s0] sm:$0xff]
  %3 = xla_tuple %v2
  %4 = xla_tuple %3
  %v5 = vxor.u32 %v2, 2147483648
  %6 = xla_tuple %v5
  %7 = vst [vmem:[%s1] sm:$0xff] %v5
  %s8 = scalar_lea.vmem %s0, 8
  %v9 = vld [vmem:[%s8] sm:$0xff]
  %10 = xla_tuple %v9
  %11 = xla_tuple %10
  %v12 = vxor.u32 %v9, 2147483648
  %13 = xla_tuple %v12
  %s14 = scalar_lea.vmem %s1, 8
  %15 = vst [vmem:[%s14] sm:$0xff] %v12
  %s16 = scalar_lea.vmem %s0, 16
  %v17 = vld [vmem:[%s16] sm:$0xff]
  %18 = xla_tuple %v17
  %19 = xla_tuple %18
  %v20 = vxor.u32 %v17, 2147483648
  %21 = xla_tuple %v20
  %s22 = scalar_lea.vmem %s1, 16
  %23 = vst [vmem:[%s22] sm:$0xff] %v20
  %s24 = scalar_lea.vmem %s0, 24
  %v25 = vld [vmem:[%s24] sm:$0xff]
  %26 = xla_tuple %v25
  %27 = xla_tuple %26
  %v28 = vxor.u32 %v25, 2147483648
  %29 = xla_tuple %v28
  %s30 = scalar_lea.vmem %s1, 24
  %31 = vst [vmem:[%s30] sm:$0xff] %v28
  %s32 = scalar_lea.vmem %s0, 32
  %v33 = vld [vmem:[%s32] sm:$0xff]
  %34 = xla_tuple %v33
  %35 = xla_tuple %34
  %v36 = vxor.u32 %v33, 2147483648
  %37 = xla_tuple %v36
  %s38 = scalar_lea.vmem %s1, 32
  %39 = vst [vmem:[%s38] sm:$0xff] %v36
  %s40 = scalar_lea.vmem %s0, 40
  %v41 = vld [vmem:[%s40] sm:$0xff]
  %42 = xla_tuple %v41
  %43 = xla_tuple %42
  %v44 = vxor.u32 %v41, 2147483648
  %45 = xla_tuple %v44
  %s46 = scalar_lea.vmem %s1, 40
  %47 = vst [vmem:[%s46] sm:$0xff] %v44
  %s48 = scalar_lea.vmem %s0, 48
  %v49 = vld [vmem:[%s48] sm:$0xff]
  %50 = xla_tuple %v49
  %51 = xla_tuple %50
  %v52 = vxor.u32 %v49, 2147483648
  %53 = xla_tuple %v52
  %s54 = scalar_lea.vmem %s1, 48
  %55 = vst [vmem:[%s54] sm:$0xff] %v52
  %s56 = scalar_lea.vmem %s0, 56
  %v57 = vld [vmem:[%s56] sm:$0xff]
  %58 = xla_tuple %v57
  %59 = xla_tuple %58
  %v60 = vxor.u32 %v57, 2147483648
  %61 = xla_tuple %v60
  %s62 = scalar_lea.vmem %s1, 56
  %63 = vst [vmem:[%s62] sm:$0xff] %v60

// kernel: parallel_rx_complex_forward.1
$region0: #{parallel_rx_complex_forward.1}
  #allocation0 [shape = 'u32[]', space=smem, size = 0x4, offset = 0x4, fixed_abs, tag = 'smem constant byte address 0x4 - core index']
  #allocation1 [shape = 'u32[144,128]{1,0:T(1,128)}', space=vmem, size = 0x12000, scoped, tag = 'internal scratch']
  #allocation2 [shape = 'f32[8,128]{1,0:T(8,128)}', space=vmem, size = 0x1000, scoped, tag = 'scratch operand']
  %s0 = inlined_call_operand.vmem [shape: f32[8,128], index: 0, kind: input, shape index: {}]
  %s1 = inlined_call_operand.vmem [shape: f32[128,128], index: 1, kind: input, shape index: {}]
  %s2 = inlined_call_operand.vmem [shape: f32[8,128], index: 2, kind: output, shape index: {}]
  %s3 = sld [smem:[#allocation0]]
  $region26: #{parallel_rx_complex_forward.1} parent=0
    _
  %s5 = ssub.s32 1, %s3
  %s6 = scalar_select 0, %s5, %s3
  // Predicated region
  $region2: #{parallel_rx_complex_forward.1} parent=0 // pred_check
    _
  $region3: #{parallel_rx_complex_forward.1} parent=0 // pred_check_branch
    %8 = sbr.rel (0) target = $region5
  $region4: #{parallel_rx_complex_forward.1} parent=0 // pred_region
    _
  $region5: #{parallel_rx_complex_forward.1} parent=0 // pred_fallthru
    _
  // Predicated region
  $region6: #{parallel_rx_complex_forward.1} parent=0 // pred_check
    _
  $region7: #{parallel_rx_complex_forward.1} parent=0 // pred_check_branch
    %10 = sbr.rel (0) target = $region9
  $region8: #{parallel_rx_complex_forward.1} parent=0 // pred_region
    _
  $region9: #{parallel_rx_complex_forward.1} parent=0 // pred_fallthru
    _
  %p11 = scmp.eq.s32.totalorder 0, 0
  // Predicated region
  $region10: #{parallel_rx_complex_forward.1} parent=0 // pred_check
    %p12 = pneg %p11
  $region11: #{parallel_rx_complex_forward.1} parent=0 // pred_check_branch
    %14 = sbr.rel (%p12) target = $region13
  $region12: #{parallel_rx_complex_forward.1} parent=0 // pred_region
    %15 = vst [vmem:[#allocation2] sm:$0xff] 0.0
  $region13: #{parallel_rx_complex_forward.1} parent=0 // pred_fallthru
    _
  %v16 = vld [vmem:[#allocation2] sm:$0xff]
  %v17 = vld [vmem:[%s0] sm:$0xff]
  %v18 = vld [vmem:[%s1] sm:$0xff]
  %v19 = vld [vmem:[%s1 + $0x8] sm:$0xff]
  %v20 = vld [vmem:[%s1 + $0x10] sm:$0xff]
  %v21 = vld [vmem:[%s1 + $0x18] sm:$0xff]
  %v22 = vld [vmem:[%s1 + $0x20] sm:$0xff]
  %v23 = vld [vmem:[%s1 + $0x28] sm:$0xff]
  %v24 = vld [vmem:[%s1 + $0x30] sm:$0xff]
  %v25 = vld [vmem:[%s1 + $0x38] sm:$0xff]
  %v26 = vld [vmem:[%s1 + $0x40] sm:$0xff]
  %v27 = vld [vmem:[%s1 + $0x48] sm:$0xff]
  %v28 = vld [vmem:[%s1 + $0x50] sm:$0xff]
  %v29 = vld [vmem:[%s1 + $0x58] sm:$0xff]
  %v30 = vld [vmem:[%s1 + $0x60] sm:$0xff]
  %v31 = vld [vmem:[%s1 + $0x68] sm:$0xff]
  %v32 = vld [vmem:[%s1 + $0x70] sm:$0xff]
  %v33 = vld [vmem:[%s1 + $0x78] sm:$0xff]
  %34 = vmatprep.subr.mxu0 0.0
  %35 = vmatpush1.msra.mxu0 %v18
  %36 = vmatprep.subr.mxu0 0.0
  %37 = vmatpush1.msra.mxu0 %v19
  %38 = vmatprep.subr.mxu0 0.0
  %39 = vmatpush1.msra.mxu0 %v20
  %40 = vmatprep.subr.mxu0 0.0
  %41 = vmatpush1.msra.mxu0 %v21
  %42 = vmatprep.subr.mxu0 0.0
  %43 = vmatpush1.msra.mxu0 %v22
  %44 = vmatprep.subr.mxu0 0.0
  %45 = vmatpush1.msra.mxu0 %v23
  %46 = vmatprep.subr.mxu0 0.0
  %47 = vmatpush1.msra.mxu0 %v24
  %48 = vmatprep.subr.mxu0 0.0
  %49 = vmatpush1.msra.mxu0 %v25
  %50 = vmatprep.subr.mxu0 0.0
  %51 = vmatpush1.msra.mxu0 %v26
  %52 = vmatprep.subr.mxu0 0.0
  %53 = vmatpush1.msra.mxu0 %v27
  %54 = vmatprep.subr.mxu0 0.0
  %55 = vmatpush1.msra.mxu0 %v28
  %56 = vmatprep.subr.mxu0 0.0
  %57 = vmatpush1.msra.mxu0 %v29
  %58 = vmatprep.subr.mxu0 0.0
  %59 = vmatpush1.msra.mxu0 %v30
  %60 = vmatprep.subr.mxu0 0.0
  %61 = vmatpush1.msra.mxu0 %v31
  %62 = vmatprep.subr.mxu0 0.0
  %63 = vmatpush1.msra.mxu0 %v32
  %64 = vmatprep.subr.mxu0 0.0
  %65 = vmatpush1.msra.mxu0 %v33
  %66 = vmatprep.subr.mxu0 0.0
  %67 = vmatpush1.msra.mxu0 0.0
  %68 = vmatprep.subr.mxu0 0.0
  %69 = vmatpush1.msra.mxu0 0.0
  %70 = vmatprep.subr.mxu0 0.0
  %71 = vmatpush1.msra.mxu0 0.0
  %72 = vmatprep.subr.mxu0 0.0
  %73 = vmatpush1.msra.mxu0 0.0
  %74 = vmatprep.subr.mxu0 0.0
  %75 = vmatpush1.msra.mxu0 0.0
  %76 = vmatprep.subr.mxu0 0.0
  %77 = vmatpush1.msra.mxu0 0.0
  %78 = vmatprep.subr.mxu0 0.0
  %79 = vmatpush1.msra.mxu0 0.0
  %80 = vmatprep.subr.mxu0 0.0
  %81 = vmatpush1.msra.mxu0 0.0
  %82 = vmatprep.subr.mxu0 0.0
  %83 = vmatpush1.msra.mxu0 0.0
  %84 = vmatprep.subr.mxu0 0.0
  %85 = vmatpush1.msra.mxu0 0.0
  %86 = vmatprep.subr.mxu0 0.0
  %87 = vmatpush1.msra.mxu0 0.0
  %88 = vmatprep.subr.mxu0 0.0
  %89 = vmatpush1.msra.mxu0 0.0
  %90 = vmatprep.subr.mxu0 0.0
  %91 = vmatpush1.msra.mxu0 0.0
  %92 = vmatprep.subr.mxu0 0.0
  %93 = vmatpush1.msra.mxu0 0.0
  %94 = vmatprep.subr.mxu0 0.0
  %95 = vmatpush1.msra.mxu0 0.0
  %96 = vmatprep.subr.mxu0 0.0
  %97 = vmatpush1.msra.mxu0 0.0
  %98 = vmatprep.mubr.f32.mxu0 0.0
  %99 = vmatmul.mubr.f32.gmra.mrb[0].mxu0 %v17
  %v100 = vpop.f32.mrb[0].mxu0
  %v101 = vadd.f32 0.0, %v100
  %v102 = vpop.f32.mrb[0].mxu0
  %103 = vdwg.mxu0
  %v104 = vadd.f32 %v16, %v101
  %105 = vst [vmem:[#allocation2] sm:$0xff] %v104
  // Predicated region
  $region14: #{parallel_rx_complex_forward.1} parent=0 // pred_check
    %p106 = pneg %p11
  $region15: #{parallel_rx_complex_forward.1} parent=0 // pred_check_branch
    %108 = sbr.rel (%p106) target = $region17
  $region16: #{parallel_rx_complex_forward.1} parent=0 // pred_region
    %v109 = vld [vmem:[#allocation2] sm:$0xff]
    %110 = vst [vmem:[%s2] sm:$0xff] %v109
  $region17: #{parallel_rx_complex_forward.1} parent=0 // pred_fallthru
    _
  // Predicated region
  $region18: #{parallel_rx_complex_forward.1} parent=0 // pred_check
    _
  $region19: #{parallel_rx_complex_forward.1} parent=0 // pred_check_branch
    %112 = sbr.rel (0) target = $region21
  $region20: #{parallel_rx_complex_forward.1} parent=0 // pred_region
    _
  $region21: #{parallel_rx_complex_forward.1} parent=0 // pred_fallthru
    _
  // Predicated region
  $region22: #{parallel_rx_complex_forward.1} parent=0 // pred_check
    _
  $region23: #{parallel_rx_complex_forward.1} parent=0 // pred_check_branch
    %114 = sbr.rel (0) target = $region25
  $region24: #{parallel_rx_complex_forward.1} parent=0 // pred_region
    _
  $region25: #{parallel_rx_complex_forward.1} parent=0 // pred_fallthru
    _

</llo_original>
